<compile_context>
chip_gen: v6e
topology: v6e:2x2x1
jax: 0.10.0
libtpu: 0.0.40
codegen_flags: <defaults>
</compile_context>

<pallas_src>
import jax
import jax.numpy as jnp
from jax import lax
from jax.experimental import pallas as pl
from jax.experimental.pallas import tpu as pltpu


def _round_up(x, m):
    return (x + m - 1) // m * m


# ---------------------------------------------------------------------------
# Fused per-layer kernel.  grid = (num_layers,), sequential.
#
#   layer 0 (pl.when): x_state <- x0
#   every layer l:
#     X1   = relu(X @ Wv[l] + bv[l])          (theta_v2e)
#     Y    = (H^T @ X1) * (1/deg_e)           node -> hyperedge mean
#     X2   = (H @ Y)    * (1/deg_v)           hyperedge -> node mean
#     X3   = X2 @ We[l] + be[l]               (theta_e2v)
#     X    = relu(X3 * (1 + topo[l]))         == relu(x + x*dropout(topo)), eval
#   The state lives in x_ref (the kernel output); written to HBM once at the end.
#
# TODO(synk): training-mode stochastic nn.Dropout omitted; eval semantics used.
# ---------------------------------------------------------------------------
def _fused_layers_kernel(x0_ref, h_ref, inv_de_ref, inv_dv_ref, topo_ref,
                         wv_ref, bv_ref, we_ref, be_ref,
                         x_ref):
    l = pl.program_id(0)

    # Layer 0: seed the resident state from the initial node features.
    @pl.when(l == 0)
    def _():
        x_ref[...] = x0_ref[...]

    # theta_v2e + relu (bf16 MXU operands, f32 accumulation / epilogue).
    X1 = jnp.maximum(
        jnp.dot(x_ref[...], wv_ref[0], preferred_element_type=jnp.float32)
        + bv_ref[0], 0.0)                                           # [Np, Cp] f32

    # node -> hyperedge mean: contract H's node axis directly on the MXU
    # (transposed-LHS matmul, no materialized H^T), then scale rows by 1/deg_e
    # in f32.  (If lowering ever inserts a per-layer vxpose of H, precompute H^T
    # in the wrapper instead.)
    Y = lax.dot_general(h_ref[...], X1.astype(jnp.bfloat16),
                        dimension_numbers=(((0,), (0,)), ((), ())),
                        preferred_element_type=jnp.float32)         # [Ep, Cp]
    Y = Y * inv_de_ref[...]                                         # rows /= deg_e

    # hyperedge -> node mean, 1/deg_v applied in f32.
    X2 = jnp.dot(h_ref[...], Y.astype(jnp.bfloat16),
                 preferred_element_type=jnp.float32)                # [Np, Cp]
    X2 = X2 * inv_dv_ref[...]                                       # rows /= deg_v

    # theta_e2v.
    X3 = jnp.dot(X2.astype(jnp.bfloat16), we_ref[0],
                 preferred_element_type=jnp.float32) + be_ref[0]    # [Np, Cp]

    # x + x*topo, then relu  ==  relu(x * (1 + topo))  (eval-mode dropout).
    x_ref[...] = jnp.maximum(X3 * (1.0 + topo_ref[0]), 0.0).astype(x_ref.dtype)


# ---------------------------------------------------------------------------
# Wrapper: pad once, precompute the topo recurrence, single pallas_call.
# ---------------------------------------------------------------------------
def pdhnhn_forward(x, H, pd, topo_params, layer_params):
    f32, bf16 = jnp.float32, jnp.bfloat16
    N, Cin = x.shape
    _, E = H.shape
    L = len(layer_params)
    Chid = layer_params[0]["wv"].shape[1]

    LANE, SUB = 128, 16                       # 16 sublanes: native bf16 tile
    C_pad = _round_up(max(Cin, Chid), LANE)
    N_pad = _round_up(N, SUB)
    E_pad = _round_up(E, LANE)

    # --- topology branch + per-layer topology_linear (depends only on pd) ----
    # TODO(synk): exact TopologicalFeatureNetwork architecture unavailable in the
    #             given source; 2-layer point-wise MLP + mean-pool over PD points.
    h = jnp.maximum(pd.astype(f32) @ topo_params["w1"] + topo_params["b1"], 0.0)
    h = h @ topo_params["w2"] + topo_params["b2"]
    topo = jnp.mean(h, axis=0, keepdims=True)                       # [1, Cin]
    topos = []
    for lp in layer_params:
        topo = topo @ lp["wt"] + lp["bt"]                           # topology_linear[i]
        topos.append(topo)
    topo_out = topos[-1]                                            # [1, Chid]
    topo_stack = jnp.stack(
        [jnp.zeros((1, C_pad), f32).at[:, :t.shape[1]].set(t) for t in topos])

    # --- constant glue: pad once; keep H unnormalized (exact 0/1 in bf16) ----
    Hp = jnp.zeros((N_pad, E_pad), f32).at[:N, :E].set(H.astype(f32))
    inv_de = (1.0 / jnp.maximum(jnp.sum(Hp, axis=0), 1.0)).reshape(E_pad, 1)
    inv_dv = (1.0 / jnp.maximum(jnp.sum(Hp, axis=1), 1.0)).reshape(N_pad, 1)
    Hb = Hp.astype(bf16)

    x0 = jnp.zeros((N_pad, C_pad), bf16).at[:N, :Cin].set(x.astype(bf16))

    def pad_w(w):
        return jnp.zeros((C_pad, C_pad), f32).at[:w.shape[0], :w.shape[1]].set(w)

    def pad_b(b):
        return jnp.zeros((1, C_pad), f32).at[:, :b.shape[1]].set(b)

    Wv = jnp.stack([pad_w(lp["wv"]) for lp in layer_params]).astype(bf16)
    Bv = jnp.stack([pad_b(lp["bv"]) for lp in layer_params])
    We = jnp.stack([pad_w(lp["we"]) for lp in layer_params]).astype(bf16)
    Be = jnp.stack([pad_b(lp["be"]) for lp in layer_params])

    # Grid-invariant inputs: single-buffered (index never changes across layers).
    def invariant(shape):
        nd = len(shape)
        return pl.BlockSpec(shape, lambda l, _n=nd: (0,) * _n,
                            pipeline_mode=pl.Buffered(1))

    # Per-layer blocks: default double buffering (prefetch next layer's weights).
    def per_layer(tail):
        return pl.BlockSpec((1,) + tail, lambda l: (l, 0, 0))

    args = (x0, Hb, inv_de, inv_dv, topo_stack, Wv, Bv, We, Be)

    flops = L * (4 * N_pad * C_pad * C_pad + 4 * N_pad * E_pad * C_pad)
    bytes_accessed = (sum(int(a.size) * a.dtype.itemsize for a in args)
                      + N_pad * C_pad * 2)

    # VMEM estimate: single-buffered invariants + 2x-buffered per-layer blocks
    # + resident output state + live f32 temporaries (X1, Y, X2/X3, bf16 casts).
    est_vmem = (
        N_pad * C_pad * 2                      # x0 (bf16, 1 buf)
        + N_pad * E_pad * 2                    # H  (bf16, 1 buf)
        + (E_pad + N_pad) * LANE * 4           # 1/deg vectors (lane-padded)
        + 2 * (2 * C_pad * C_pad * 2 + 3 * 8 * C_pad * 4)   # Wv/We + bv/be/topo
        + 2 * N_pad * C_pad * 2                # resident output state
        + 3 * N_pad * C_pad * 4 + E_pad * C_pad * 4         # f32 temporaries
        + (N_pad + E_pad) * C_pad * 2          # bf16 cast temporaries
    )
    try:
        vmem_cap = int(pltpu.get_tpu_info().vmem_capacity_bytes)  # 64 MiB v7x, 128 MiB v5e/v6e
    except Exception:
        vmem_cap = 64 * 1024 * 1024
    vmem_limit = int(min(0.85 * vmem_cap, max(2 * est_vmem, 32 * 1024 * 1024)))

    x_out = pl.pallas_call(
        _fused_layers_kernel,
        grid=(L,),
        in_specs=[
            invariant(x0.shape), invariant(Hb.shape),
            invariant(inv_de.shape), invariant(inv_dv.shape),
            per_layer((1, C_pad)),                          # topo_stack
            per_layer((C_pad, C_pad)), per_layer((1, C_pad)),   # Wv, Bv
            per_layer((C_pad, C_pad)), per_layer((1, C_pad)),   # We, Be
        ],
        out_specs=pl.BlockSpec((N_pad, C_pad), lambda l: (0, 0)),
        out_shape=jax.ShapeDtypeStruct((N_pad, C_pad), bf16),
        compiler_params=pltpu.CompilerParams(
            dimension_semantics=("arbitrary",),
            vmem_limit_bytes=vmem_limit),
        cost_estimate=pl.CostEstimate(flops=int(flops), transcendentals=0,
                                      bytes_accessed=int(bytes_accessed)),
    )(*args)

    return x_out[:N, :Chid].astype(f32), topo_out


# ---------------------------------------------------------------------------
# Deterministic parameter init (synthetic; mirrors nn.Linear fan-in uniform).
# ---------------------------------------------------------------------------
def init_params(key, input_channels, hidden_channels, num_layers):
    def linear(k, fan_in, fan_out):
        k1, k2 = jax.random.split(k)
        lim = 1.0 / float(fan_in) ** 0.5
        w = jax.random.uniform(k1, (fan_in, fan_out), jnp.float32, -lim, lim)
        b = jax.random.uniform(k2, (1, fan_out), jnp.float32, -lim, lim)
        return w, b

    keys = jax.random.split(key, 2 + 3 * num_layers)
    w1, b1 = linear(keys[0], 5, input_channels)
    w2, b2 = linear(keys[1], input_channels, input_channels)
    topo_params = {"w1": w1, "b1": b1, "w2": w2, "b2": b2}

    layers = []
    for i in range(num_layers):
        cin = input_channels if i == 0 else hidden_channels
        cout = hidden_channels
        wv, bv = linear(keys[2 + 3 * i], cin, cout)   # HNHNConv theta_v2e
        we, be = linear(keys[3 + 3 * i], cout, cout)  # HNHNConv theta_e2v
        wt, bt = linear(keys[4 + 3 * i], cin, cout)   # topology_linear[i]
        layers.append({"wv": wv, "bv": bv, "we": we, "be": be, "wt": wt, "bt": bt})
    return topo_params, layers


if __name__ == "__main__":
    key = jax.random.PRNGKey(0)
    k_x, k_h, k_pd, k_p = jax.random.split(key, 4)

    N, E = 16, 8                       # nodes, hyperedges
    input_channels, hidden_channels, num_layers = 16, 32, 2
    P = 8                              # persistence-diagram points

    x = jax.random.normal(k_x, (N, input_channels), jnp.float32)
    H = (jax.random.uniform(k_h, (N, E)) < 0.4).astype(jnp.float32)   # incidence
    pd = jax.random.normal(k_pd, (P, 5), jnp.float32)

    topo_params, layer_params = init_params(k_p, input_channels, hidden_channels,
                                            num_layers)

    x_out, topo_out = pdhnhn_forward(x, H, pd, topo_params, layer_params)
    jax.block_until_ready((x_out, topo_out))

    assert x_out.shape == (N, hidden_channels)
    assert topo_out.shape == (1, hidden_channels)
    assert bool(jnp.all(jnp.isfinite(x_out))) and bool(jnp.all(jnp.isfinite(topo_out)))
    print("KERNEL_OK")
</pallas_src>

<mosaic_0001>
module attributes {stable_mosaic.version = 11 : i64} {
  func.func @_fused_layers_kernel(%arg0: i32, %arg1: memref<16x128xbf16, #tpu.memory_space<vmem>>, %arg2: memref<16x128xbf16, #tpu.memory_space<vmem>>, %arg3: memref<128x1xf32, #tpu.memory_space<vmem>>, %arg4: memref<16x1xf32, #tpu.memory_space<vmem>>, %arg5: memref<1x1x128xf32, #tpu.memory_space<vmem>>, %arg6: memref<1x128x128xbf16, #tpu.memory_space<vmem>>, %arg7: memref<1x1x128xf32, #tpu.memory_space<vmem>>, %arg8: memref<1x128x128xbf16, #tpu.memory_space<vmem>>, %arg9: memref<1x1x128xf32, #tpu.memory_space<vmem>>, %arg10: memref<16x128xbf16, #tpu.memory_space<vmem>>) attributes {dimension_semantics = [#tpu.dimension_semantics<arbitrary>], iteration_bounds = array<i64: 2>, scalar_prefetch = 0 : i64, scratch_operands = 0 : i64, tpu.core_type = #tpu.core_type<tc>, window_params = [{pipeline_mode = #tpu.pipeline_mode<synchronous>, transform_indices = @transform_0, window_bounds = array<i64: 16, 128>}, {pipeline_mode = #tpu.pipeline_mode<synchronous>, transform_indices = @transform_1, window_bounds = array<i64: 16, 128>}, {pipeline_mode = #tpu.pipeline_mode<synchronous>, transform_indices = @transform_2, window_bounds = array<i64: 128, 1>}, {pipeline_mode = #tpu.pipeline_mode<synchronous>, transform_indices = @transform_3, window_bounds = array<i64: 16, 1>}, {transform_indices = @transform_4, window_bounds = array<i64: 1, 1, 128>}, {transform_indices = @transform_5, window_bounds = array<i64: 1, 128, 128>}, {transform_indices = @transform_6, window_bounds = array<i64: 1, 1, 128>}, {transform_indices = @transform_7, window_bounds = array<i64: 1, 128, 128>}, {transform_indices = @transform_8, window_bounds = array<i64: 1, 1, 128>}, {pipeline_mode = #tpu.pipeline_mode<synchronous>, transform_indices = @transform_9, window_bounds = array<i64: 16, 128>}]} {
    %c0_i32 = arith.constant 0 : i32
    %0 = arith.cmpi eq, %arg0, %c0_i32 : i32
    %1 = arith.extui %0 : i1 to i32
    %c0_i32_0 = arith.constant 0 : i32
    %2 = arith.cmpi ne, %1, %c0_i32_0 : i32
    scf.if %2 {
      %c0_33 = arith.constant 0 : index
      %c0_34 = arith.constant 0 : index
      %43 = vector.load %arg1[%c0_33, %c0_34] : memref<16x128xbf16, #tpu.memory_space<vmem>>, vector<16x128xbf16>
      %c0_35 = arith.constant 0 : index
      %c0_36 = arith.constant 0 : index
      %44 = vector.load %arg10[%c0_35, %c0_36] : memref<16x128xbf16, #tpu.memory_space<vmem>>, vector<16x128xbf16>
      tpu.vector_store %arg10[%c0_35, %c0_36], %43 {strides = array<i32>} : memref<16x128xbf16, #tpu.memory_space<vmem>>, vector<16x128xbf16>,
    } else {
    }
    %c0 = arith.constant 0 : index
    %c0_1 = arith.constant 0 : index
    %3 = vector.load %arg10[%c0, %c0_1] : memref<16x128xbf16, #tpu.memory_space<vmem>>, vector<16x128xbf16>
    %c0_2 = arith.constant 0 : index
    %c0_3 = arith.constant 0 : index
    %c0_4 = arith.constant 0 : index
    %4 = vector.load %arg6[%c0_2, %c0_3, %c0_4] : memref<1x128x128xbf16, #tpu.memory_space<vmem>>, vector<1x128x128xbf16>
    %5 = vector.shape_cast %4 : vector<1x128x128xbf16> to vector<128x128xbf16>
    %cst = arith.constant dense<0.000000e+00> : vector<16x128xf32>
    %6 = tpu.matmul %3, %5, %cst {dimension_numbers = #tpu.dot_dimension_numbers<[1], [0], [0], [1], [0, 0, 1, 1], [], []>} : vector<16x128xbf16>, vector<128x128xbf16>, vector<16x128xf32> -> vector<16x128xf32>
    %c0_5 = arith.constant 0 : index
    %c0_6 = arith.constant 0 : index
    %c0_7 = arith.constant 0 : index
    %7 = vector.load %arg7[%c0_5, %c0_6, %c0_7] : memref<1x1x128xf32, #tpu.memory_space<vmem>>, vector<1x1x128xf32>
    %8 = vector.shape_cast %7 : vector<1x1x128xf32> to vector<1x128xf32>
    %9 = vector.broadcast %8 : vector<1x128xf32> to vector<16x128xf32>
    %10 = arith.addf %6, %9 : vector<16x128xf32>
    %cst_8 = arith.constant 0.000000e+00 : f32
    %11 = vector.broadcast %cst_8 : f32 to vector<16x128xf32>
    %12 = arith.maximumf %10, %11 : vector<16x128xf32>
    %c0_9 = arith.constant 0 : index
    %c0_10 = arith.constant 0 : index
    %13 = vector.load %arg2[%c0_9, %c0_10] : memref<16x128xbf16, #tpu.memory_space<vmem>>, vector<16x128xbf16>
    %14 = arith.truncf %12 : vector<16x128xf32> to vector<16x128xbf16>
    %cst_11 = arith.constant dense<0.000000e+00> : vector<128x128xf32>
    %15 = tpu.matmul %13, %14, %cst_11 {dimension_numbers = #tpu.dot_dimension_numbers<[0], [0], [1], [1], [0, 1, 1, 1], [], []>} : vector<16x128xbf16>, vector<16x128xbf16>, vector<128x128xf32> -> vector<128x128xf32>
    %c0_12 = arith.constant 0 : index
    %c0_13 = arith.constant 0 : index
    %16 = vector.load %arg3[%c0_12, %c0_13] : memref<128x1xf32, #tpu.memory_space<vmem>>, vector<128x1xf32>
    %17 = vector.broadcast %16 : vector<128x1xf32> to vector<128x128xf32>
    %18 = arith.mulf %15, %17 : vector<128x128xf32>
    %c0_14 = arith.constant 0 : index
    %c0_15 = arith.constant 0 : index
    %19 = vector.load %arg2[%c0_14, %c0_15] : memref<16x128xbf16, #tpu.memory_space<vmem>>, vector<16x128xbf16>
    %20 = arith.truncf %18 : vector<128x128xf32> to vector<128x128xbf16>
    %cst_16 = arith.constant dense<0.000000e+00> : vector<16x128xf32>
    %21 = tpu.matmul %19, %20, %cst_16 {dimension_numbers = #tpu.dot_dimension_numbers<[1], [0], [0], [1], [0, 0, 1, 1], [], []>} : vector<16x128xbf16>, vector<128x128xbf16>, vector<16x128xf32> -> vector<16x128xf32>
    %c0_17 = arith.constant 0 : index
    %c0_18 = arith.constant 0 : index
    %22 = vector.load %arg4[%c0_17, %c0_18] : memref<16x1xf32, #tpu.memory_space<vmem>>, vector<16x1xf32>
    %23 = vector.broadcast %22 : vector<16x1xf32> to vector<16x128xf32>
    %24 = arith.mulf %21, %23 : vector<16x128xf32>
    %25 = arith.truncf %24 : vector<16x128xf32> to vector<16x128xbf16>
    %c0_19 = arith.constant 0 : index
    %c0_20 = arith.constant 0 : index
    %c0_21 = arith.constant 0 : index
    %26 = vector.load %arg8[%c0_19, %c0_20, %c0_21] : memref<1x128x128xbf16, #tpu.memory_space<vmem>>, vector<1x128x128xbf16>
    %27 = vector.shape_cast %26 : vector<1x128x128xbf16> to vector<128x128xbf16>
    %cst_22 = arith.constant dense<0.000000e+00> : vector<16x128xf32>
    %28 = tpu.matmul %25, %27, %cst_22 {dimension_numbers = #tpu.dot_dimension_numbers<[1], [0], [0], [1], [0, 0, 1, 1], [], []>} : vector<16x128xbf16>, vector<128x128xbf16>, vector<16x128xf32> -> vector<16x128xf32>
    %c0_23 = arith.constant 0 : index
    %c0_24 = arith.constant 0 : index
    %c0_25 = arith.constant 0 : index
    %29 = vector.load %arg9[%c0_23, %c0_24, %c0_25] : memref<1x1x128xf32, #tpu.memory_space<vmem>>, vector<1x1x128xf32>
    %30 = vector.shape_cast %29 : vector<1x1x128xf32> to vector<1x128xf32>
    %31 = vector.broadcast %30 : vector<1x128xf32> to vector<16x128xf32>
    %32 = arith.addf %28, %31 : vector<16x128xf32>
    %c0_26 = arith.constant 0 : index
    %c0_27 = arith.constant 0 : index
    %c0_28 = arith.constant 0 : index
    %33 = vector.load %arg5[%c0_26, %c0_27, %c0_28] : memref<1x1x128xf32, #tpu.memory_space<vmem>>, vector<1x1x128xf32>
    %34 = vector.shape_cast %33 : vector<1x1x128xf32> to vector<1x128xf32>
    %cst_29 = arith.constant 1.000000e+00 : f32
    %35 = vector.broadcast %cst_29 : f32 to vector<1x128xf32>
    %36 = arith.addf %35, %34 : vector<1x128xf32>
    %37 = vector.broadcast %36 : vector<1x128xf32> to vector<16x128xf32>
    %38 = arith.mulf %32, %37 : vector<16x128xf32>
    %cst_30 = arith.constant 0.000000e+00 : f32
    %39 = vector.broadcast %cst_30 : f32 to vector<16x128xf32>
    %40 = arith.maximumf %38, %39 : vector<16x128xf32>
    %41 = arith.truncf %40 : vector<16x128xf32> to vector<16x128xbf16>
    %c0_31 = arith.constant 0 : index
    %c0_32 = arith.constant 0 : index
    %42 = vector.load %arg10[%c0_31, %c0_32] : memref<16x128xbf16, #tpu.memory_space<vmem>>, vector<16x128xbf16>
    tpu.vector_store %arg10[%c0_31, %c0_32], %41 {strides = array<i32>} : memref<16x128xbf16, #tpu.memory_space<vmem>>, vector<16x128xbf16>,
    return
  }
  func.func @transform_0(%arg0: i32) -> (i32, i32) {
    %c0_i32 = arith.constant 0 : i32
    %c0_i32_0 = arith.constant 0 : i32
    %c0_i32_1 = arith.constant 0 : i32
    return %c0_i32, %c0_i32_0 : i32, i32
  }
  func.func @transform_1(%arg0: i32) -> (i32, i32) {
    %c0_i32 = arith.constant 0 : i32
    %c0_i32_0 = arith.constant 0 : i32
    %c0_i32_1 = arith.constant 0 : i32
    return %c0_i32, %c0_i32_0 : i32, i32
  }
  func.func @transform_2(%arg0: i32) -> (i32, i32) {
    %c0_i32 = arith.constant 0 : i32
    %c0_i32_0 = arith.constant 0 : i32
    %c0_i32_1 = arith.constant 0 : i32
    return %c0_i32, %c0_i32_0 : i32, i32
  }
  func.func @transform_3(%arg0: i32) -> (i32, i32) {
    %c0_i32 = arith.constant 0 : i32
    %c0_i32_0 = arith.constant 0 : i32
    %c0_i32_1 = arith.constant 0 : i32
    return %c0_i32, %c0_i32_0 : i32, i32
  }
  func.func @transform_4(%arg0: i32) -> (i32, i32, i32) {
    %c0_i32 = arith.constant 0 : i32
    %c0_i32_0 = arith.constant 0 : i32
    %c0_i32_1 = arith.constant 0 : i32
    return %arg0, %c0_i32, %c0_i32_0 : i32, i32, i32
  }
  func.func @transform_5(%arg0: i32) -> (i32, i32, i32) {
    %c0_i32 = arith.constant 0 : i32
    %c0_i32_0 = arith.constant 0 : i32
    %c0_i32_1 = arith.constant 0 : i32
    return %arg0, %c0_i32, %c0_i32_0 : i32, i32, i32
  }
  func.func @transform_6(%arg0: i32) -> (i32, i32, i32) {
    %c0_i32 = arith.constant 0 : i32
    %c0_i32_0 = arith.constant 0 : i32
    %c0_i32_1 = arith.constant 0 : i32
    return %arg0, %c0_i32, %c0_i32_0 : i32, i32, i32
  }
  func.func @transform_7(%arg0: i32) -> (i32, i32, i32) {
    %c0_i32 = arith.constant 0 : i32
    %c0_i32_0 = arith.constant 0 : i32
    %c0_i32_1 = arith.constant 0 : i32
    return %arg0, %c0_i32, %c0_i32_0 : i32, i32, i32
  }
  func.func @transform_8(%arg0: i32) -> (i32, i32, i32) {
    %c0_i32 = arith.constant 0 : i32
    %c0_i32_0 = arith.constant 0 : i32
    %c0_i32_1 = arith.constant 0 : i32
    return %arg0, %c0_i32, %c0_i32_0 : i32, i32, i32
  }
  func.func @transform_9(%arg0: i32) -> (i32, i32) {
    %c0_i32 = arith.constant 0 : i32
    %c0_i32_0 = arith.constant 0 : i32
    %c0_i32_1 = arith.constant 0 : i32
    return %c0_i32, %c0_i32_0 : i32, i32
  }
}

</mosaic_0001>

<llo_original>
// kernel: tpu_custom_call.1
$region0: #{tpu_custom_call.1}
  #allocation0 [shape = 'u32[]', space=smem, size = 0x4, offset = 0x4, fixed_abs, tag = 'smem constant byte address 0x4 - core index']
  #allocation1 [shape = 'u32[144,128]{1,0:T(1,128)}', space=vmem, size = 0x12000, scoped, tag = 'internal scratch']
  %s0 = inlined_call_operand.vmem [shape: bf16[16,128], index: 0, kind: input, shape index: {}]
  %s1 = inlined_call_operand.vmem [shape: bf16[16,128], index: 1, kind: input, shape index: {}]
  %s2 = inlined_call_operand.vmem [shape: f32[128,1], index: 2, kind: input, shape index: {}]
  %s3 = inlined_call_operand.vmem [shape: f32[16,1], index: 3, kind: input, shape index: {}]
  %s4 = inlined_call_operand.vmem [shape: f32[2,1,128], index: 4, kind: input, shape index: {}]
  %s5 = inlined_call_operand.vmem [shape: bf16[2,128,128], index: 5, kind: input, shape index: {}]
  %s6 = inlined_call_operand.vmem [shape: f32[2,1,128], index: 6, kind: input, shape index: {}]
  %s7 = inlined_call_operand.hbm [shape: bf16[2,128,128], index: 7, kind: input, shape index: {}]
  %s8 = inlined_call_operand.vmem [shape: f32[2,1,128], index: 8, kind: input, shape index: {}]
  %s9 = inlined_call_operand.hbm [shape: bf16[16,128], index: 9, kind: output, shape index: {}]
  %s10 = sld [smem:[#allocation0]]
  $region77: #{tpu_custom_call.1} parent=0
    _
  %s12 = ssub.s32 1, %s10
  %s13 = scalar_select 0, %s12, %s10
  $region1: #{tpu_custom_call.1} parent=0
    #allocation2 [shape = 'u8[65536]{0}', space=vmem, size = 0x10000, scoped, tag = 'input window, operand 7']
    #allocation3 [shape = 's32[2]{0}', space=sflag, size = 0x8, scoped, tag = 'scoped memory for tpu_custom_call.1']
    #allocation4 [shape = 's32[2]{0}', space=sflag, size = 0x8, scoped, tag = 'scoped memory for tpu_custom_call.1']
    #allocation5 [shape = 'u8[4096]{0}', space=vmem, size = 0x1000, scoped, tag = 'output window, operand 0, single buffered']
    %14 = vsyncpa [#allocation3], 0
    %s15 = scalar_lea.sflag [#allocation3], 1
    %16 = vsyncpa %s15, 0
    %17 = vsyncpa [#allocation4], 0
    loop: start=0, step=1, limit=4
    $region2: #{tpu_custom_call.1} parent=1 // loop_pre_header
      _
    $region3: #{tpu_custom_call.1} parent=1 // loop_header
      %s19 = sphi 0, %s23
      %p20 = scmp.ge.s32.totalorder %s19, 4
      %s27 = sphi 0, %s27
      %s29 = sphi 0, %s27
      %s30 = sphi 0, %s29
      %s44 = sphi 0, %s30
      %s48 = sphi 0, %s48
      %s50 = sphi 0, %s48
      %s51 = sphi 0, %s50
      %s65 = sphi 0, %s51
      %s69 = sphi 0, %s69
      %s71 = sphi 0, %s69
      %s72 = sphi 0, %s71
      %s86 = sphi 0, %s72
      %s90 = sphi 0, %s90
      %s92 = sphi 0, %s90
      %s93 = sphi 0, %s92
      %s107 = sphi 0, %s93
      %s113 = sphi 0, %s115
      %s116 = sphi 0, %s113
      %s117 = sphi 0, %s116
      %s133 = sphi 0, %s117
      %s139 = sphi 0, %s141
      %s142 = sphi 0, %s139
      %s143 = sphi 0, %s142
      %s159 = sphi 0, %s143
      %s165 = sphi 0, %s167
      %s168 = sphi 0, %s165
      %s169 = sphi 0, %s168
      %s185 = sphi 0, %s169
      %s191 = sphi 0, %s193
      %s194 = sphi 0, %s191
      %s195 = sphi 0, %s194
      %s211 = sphi 0, %s195
      %s217 = sphi 0, %s219
      %s220 = sphi 0, %s217
      %s221 = sphi 0, %s220
      %s237 = sphi 0, %s221
      %s241 = sphi 0, %s241
      %s243 = sphi 0, %s241
      %s244 = sphi 0, %s243
      %s258 = sphi 0, %s244
    $region4: #{tpu_custom_call.1} parent=1 // loop_header_branch
      %22 = sbr.rel (%p20) target = $region8
    $region5: #{tpu_custom_call.1} parent=1 // loop_body
      %s24 = ssub.s32 %s19, 1
      %s25 = ssub.s32 %s19, 2
      %s26 = sadd.s32 %s19, 1
      %s28 = sadd.s32 %s27, 1
      %p31 = scmp.eq.s32.totalorder %s19, 1
      %p32 = scmp.ne.s32.totalorder %s27, %s29
      %p33 = scmp.eq.s32.totalorder %s19, 0
      %p34 = por %p32, %p33
      %p35 = scmp.ne.s32.totalorder %s27, %s29
      %p36 = scmp.eq.s32.totalorder %s24, 1
      %p37 = por %p35, %p36
      %p38 = scmp.ne.s32.totalorder %s29, %s30
      %p39 = scmp.eq.s32.totalorder %s24, 0
      %p40 = por %p38, %p39
      %p41 = scmp.ne.s32.totalorder %s29, %s30
      %p42 = scmp.eq.s32.totalorder %s25, 1
      %p43 = por %p41, %p42
      %p45 = scmp.ne.s32.totalorder %s30, %s44
      %p46 = scmp.eq.s32.totalorder %s25, 0
      %p47 = por %p45, %p46
      %s49 = sadd.s32 %s48, 1
      %p52 = scmp.eq.s32.totalorder %s19, 1
      %p53 = scmp.ne.s32.totalorder %s48, %s50
      %p54 = scmp.eq.s32.totalorder %s19, 0
      %p55 = por %p53, %p54
      %p56 = scmp.ne.s32.totalorder %s48, %s50
      %p57 = scmp.eq.s32.totalorder %s24, 1
      %p58 = por %p56, %p57
      %p59 = scmp.ne.s32.totalorder %s50, %s51
      %p60 = scmp.eq.s32.totalorder %s24, 0
      %p61 = por %p59, %p60
      %p62 = scmp.ne.s32.totalorder %s50, %s51
      %p63 = scmp.eq.s32.totalorder %s25, 1
      %p64 = por %p62, %p63
      %p66 = scmp.ne.s32.totalorder %s51, %s65
      %p67 = scmp.eq.s32.totalorder %s25, 0
      %p68 = por %p66, %p67
      %s70 = sadd.s32 %s69, 1
      %p73 = scmp.eq.s32.totalorder %s19, 1
      %p74 = scmp.ne.s32.totalorder %s69, %s71
      %p75 = scmp.eq.s32.totalorder %s19, 0
      %p76 = por %p74, %p75
      %p77 = scmp.ne.s32.totalorder %s69, %s71
      %p78 = scmp.eq.s32.totalorder %s24, 1
      %p79 = por %p77, %p78
      %p80 = scmp.ne.s32.totalorder %s71, %s72
      %p81 = scmp.eq.s32.totalorder %s24, 0
      %p82 = por %p80, %p81
      %p83 = scmp.ne.s32.totalorder %s71, %s72
      %p84 = scmp.eq.s32.totalorder %s25, 1
      %p85 = por %p83, %p84
      %p87 = scmp.ne.s32.totalorder %s72, %s86
      %p88 = scmp.eq.s32.totalorder %s25, 0
      %p89 = por %p87, %p88
      %s91 = sadd.s32 %s90, 1
      %p94 = scmp.eq.s32.totalorder %s19, 1
      %p95 = scmp.ne.s32.totalorder %s90, %s92
      %p96 = scmp.eq.s32.totalorder %s19, 0
      %p97 = por %p95, %p96
      %p98 = scmp.ne.s32.totalorder %s90, %s92
      %p99 = scmp.eq.s32.totalorder %s24, 1
      %p100 = por %p98, %p99
      %p101 = scmp.ne.s32.totalorder %s92, %s93
      %p102 = scmp.eq.s32.totalorder %s24, 0
      %p103 = por %p101, %p102
      %p104 = scmp.ne.s32.totalorder %s92, %s93
      %p105 = scmp.eq.s32.totalorder %s25, 1
      %p106 = por %p104, %p105
      %p108 = scmp.ne.s32.totalorder %s93, %s107
      %p109 = scmp.eq.s32.totalorder %s25, 0
      %p110 = por %p108, %p109
      %s111 = ssub.s32 %s19, %s26
      %p112 = scmp.eq.s32.totalorder %s111, 0
      %s114 = sadd.s32 %s113, 1
      %s115 = scalar_select %p112, %s113, %s114
      %p118 = pneg %p112
      %p119 = scmp.eq.s32.totalorder %s19, 1
      %p120 = por %p118, %p119
      %p121 = scmp.ne.s32.totalorder %s113, %s116
      %p122 = scmp.eq.s32.totalorder %s19, 0
      %p123 = por %p121, %p122
      %p124 = scmp.ne.s32.totalorder %s113, %s116
      %p125 = scmp.eq.s32.totalorder %s24, 1
      %p126 = por %p124, %p125
      %p127 = scmp.ne.s32.totalorder %s116, %s117
      %p128 = scmp.eq.s32.totalorder %s24, 0
      %p129 = por %p127, %p128
      %p130 = scmp.ne.s32.totalorder %s116, %s117
      %p131 = scmp.eq.s32.totalorder %s25, 1
      %p132 = por %p130, %p131
      %p134 = scmp.ne.s32.totalorder %s117, %s133
      %p135 = scmp.eq.s32.totalorder %s25, 0
      %p136 = por %p134, %p135
      %s137 = ssub.s32 %s19, %s26
      %p138 = scmp.eq.s32.totalorder %s137, 0
      %s140 = sadd.s32 %s139, 1
      %s141 = scalar_select %p138, %s139, %s140
      %p144 = pneg %p138
      %p145 = scmp.eq.s32.totalorder %s19, 1
      %p146 = por %p144, %p145
      %p147 = scmp.ne.s32.totalorder %s139, %s142
      %p148 = scmp.eq.s32.totalorder %s19, 0
      %p149 = por %p147, %p148
      %p150 = scmp.ne.s32.totalorder %s139, %s142
      %p151 = scmp.eq.s32.totalorder %s24, 1
      %p152 = por %p150, %p151
      %p153 = scmp.ne.s32.totalorder %s142, %s143
      %p154 = scmp.eq.s32.totalorder %s24, 0
      %p155 = por %p153, %p154
      %p156 = scmp.ne.s32.totalorder %s142, %s143
      %p157 = scmp.eq.s32.totalorder %s25, 1
      %p158 = por %p156, %p157
      %p160 = scmp.ne.s32.totalorder %s143, %s159
      %p161 = scmp.eq.s32.totalorder %s25, 0
      %p162 = por %p160, %p161
      %s163 = ssub.s32 %s19, %s26
      %p164 = scmp.eq.s32.totalorder %s163, 0
      %s166 = sadd.s32 %s165, 1
      %s167 = scalar_select %p164, %s165, %s166
      %p170 = pneg %p164
      %p171 = scmp.eq.s32.totalorder %s19, 1
      %p172 = por %p170, %p171
      %p173 = scmp.ne.s32.totalorder %s165, %s168
      %p174 = scmp.eq.s32.totalorder %s19, 0
      %p175 = por %p173, %p174
      %p176 = scmp.ne.s32.totalorder %s165, %s168
      %p177 = scmp.eq.s32.totalorder %s24, 1
      %p178 = por %p176, %p177
      %p179 = scmp.ne.s32.totalorder %s168, %s169
      %p180 = scmp.eq.s32.totalorder %s24, 0
      %p181 = por %p179, %p180
      %p182 = scmp.ne.s32.totalorder %s168, %s169
      %p183 = scmp.eq.s32.totalorder %s25, 1
      %p184 = por %p182, %p183
      %p186 = scmp.ne.s32.totalorder %s169, %s185
      %p187 = scmp.eq.s32.totalorder %s25, 0
      %p188 = por %p186, %p187
      %s189 = ssub.s32 %s19, %s26
      %p190 = scmp.eq.s32.totalorder %s189, 0
      %s192 = sadd.s32 %s191, 1
      %s193 = scalar_select %p190, %s191, %s192
      %p196 = pneg %p190
      %p197 = scmp.eq.s32.totalorder %s19, 1
      %p198 = por %p196, %p197
      %p199 = scmp.ne.s32.totalorder %s191, %s194
      %p200 = scmp.eq.s32.totalorder %s19, 0
      %p201 = por %p199, %p200
      %p202 = scmp.ne.s32.totalorder %s191, %s194
      %p203 = scmp.eq.s32.totalorder %s24, 1
      %p204 = por %p202, %p203
      %p205 = scmp.ne.s32.totalorder %s194, %s195
      %p206 = scmp.eq.s32.totalorder %s24, 0
      %p207 = por %p205, %p206
      %p208 = scmp.ne.s32.totalorder %s194, %s195
      %p209 = scmp.eq.s32.totalorder %s25, 1
      %p210 = por %p208, %p209
      %p212 = scmp.ne.s32.totalorder %s195, %s211
      %p213 = scmp.eq.s32.totalorder %s25, 0
      %p214 = por %p212, %p213
      %s215 = ssub.s32 %s19, %s26
      %p216 = scmp.eq.s32.totalorder %s215, 0
      %s218 = sadd.s32 %s217, 1
      %s219 = scalar_select %p216, %s217, %s218
      %p222 = pneg %p216
      %p223 = scmp.eq.s32.totalorder %s19, 1
      %p224 = por %p222, %p223
      %p225 = scmp.ne.s32.totalorder %s217, %s220
      %p226 = scmp.eq.s32.totalorder %s19, 0
      %p227 = por %p225, %p226
      %p228 = scmp.ne.s32.totalorder %s217, %s220
      %p229 = scmp.eq.s32.totalorder %s24, 1
      %p230 = por %p228, %p229
      %p231 = scmp.ne.s32.totalorder %s220, %s221
      %p232 = scmp.eq.s32.totalorder %s24, 0
      %p233 = por %p231, %p232
      %p234 = scmp.ne.s32.totalorder %s220, %s221
      %p235 = scmp.eq.s32.totalorder %s25, 1
      %p236 = por %p234, %p235
      %p238 = scmp.ne.s32.totalorder %s221, %s237
      %p239 = scmp.eq.s32.totalorder %s25, 0
      %p240 = por %p238, %p239
      %s242 = sadd.s32 %s241, 1
      %p245 = scmp.eq.s32.totalorder %s19, 1
      %p246 = scmp.ne.s32.totalorder %s241, %s243
      %p247 = scmp.eq.s32.totalorder %s19, 0
      %p248 = por %p246, %p247
      %p249 = scmp.ne.s32.totalorder %s241, %s243
      %p250 = scmp.eq.s32.totalorder %s24, 1
      %p251 = por %p249, %p250
      %p252 = scmp.ne.s32.totalorder %s243, %s244
      %p253 = scmp.eq.s32.totalorder %s24, 0
      %p254 = por %p252, %p253
      %p255 = scmp.ne.s32.totalorder %s243, %s244
      %p256 = scmp.eq.s32.totalorder %s25, 1
      %p257 = por %p255, %p256
      %p259 = scmp.ne.s32.totalorder %s244, %s258
      %p260 = scmp.eq.s32.totalorder %s25, 0
      %p261 = por %p259, %p260
      %p262 = scmp.le.s32.totalorder 1, %s19
      %p263 = scmp.lt.s32.totalorder %s19, 3
      %p264 = pnand %p262, %p263
      %p265 = pneg %p264
      // Predicated region
      $region9: #{tpu_custom_call.1} parent=5 // pred_check
        _
      $region10: #{tpu_custom_call.1} parent=5 // pred_check_branch
        %267 = sbr.rel (%p264) target = $region12
      $region11: #{tpu_custom_call.1} parent=5 // pred_region
        %s268 = ssub.s32 %s19, 1
        // Predicated region
        $region13: #{tpu_custom_call.1} parent=11 // pred_check
          %p269 = pneg %p40
        $region14: #{tpu_custom_call.1} parent=11 // pred_check_branch
          %271 = sbr.rel (%p269) target = $region16
        $region15: #{tpu_custom_call.1} parent=11 // pred_region
          _
        $region16: #{tpu_custom_call.1} parent=11 // pred_fallthru
          _
        // Predicated region
        $region17: #{tpu_custom_call.1} parent=11 // pred_check
          %p272 = pneg %p61
        $region18: #{tpu_custom_call.1} parent=11 // pred_check_branch
          %274 = sbr.rel (%p272) target = $region20
        $region19: #{tpu_custom_call.1} parent=11 // pred_region
          _
        $region20: #{tpu_custom_call.1} parent=11 // pred_fallthru
          _
        // Predicated region
        $region21: #{tpu_custom_call.1} parent=11 // pred_check
          %p275 = pneg %p82
        $region22: #{tpu_custom_call.1} parent=11 // pred_check_branch
          %277 = sbr.rel (%p275) target = $region24
        $region23: #{tpu_custom_call.1} parent=11 // pred_region
          _
        $region24: #{tpu_custom_call.1} parent=11 // pred_fallthru
          _
        // Predicated region
        $region25: #{tpu_custom_call.1} parent=11 // pred_check
          %p278 = pneg %p103
        $region26: #{tpu_custom_call.1} parent=11 // pred_check_branch
          %280 = sbr.rel (%p278) target = $region28
        $region27: #{tpu_custom_call.1} parent=11 // pred_region
          _
        $region28: #{tpu_custom_call.1} parent=11 // pred_fallthru
          _
      $region12: #{tpu_custom_call.1} parent=5 // pred_fallthru
        _
      %p281 = scmp.lt.s32.totalorder %s19, 2
      // Predicated region
      $region29: #{tpu_custom_call.1} parent=5 // pred_check
        %p282 = pneg %p281
      $region30: #{tpu_custom_call.1} parent=5 // pred_check_branch
        %284 = sbr.rel (%p282) target = $region32
      $region31: #{tpu_custom_call.1} parent=5 // pred_region
        // Predicated region
        $region33: #{tpu_custom_call.1} parent=31 // pred_check
          %p285 = pneg %p123
        $region34: #{tpu_custom_call.1} parent=31 // pred_check_branch
          %287 = sbr.rel (%p285) target = $region36
        $region35: #{tpu_custom_call.1} parent=31 // pred_region
          %p288 = scmp.lt.s32.totalorder %s19, 1
          %s289 = scalar_select %p288, %s19, 1
          %s290 = scalar_lea.vmem %s4, %s289
        $region36: #{tpu_custom_call.1} parent=31 // pred_fallthru
          _
        // Predicated region
        $region37: #{tpu_custom_call.1} parent=31 // pred_check
          %p291 = pneg %p149
        $region38: #{tpu_custom_call.1} parent=31 // pred_check_branch
          %293 = sbr.rel (%p291) target = $region40
        $region39: #{tpu_custom_call.1} parent=31 // pred_region
          %p294 = scmp.lt.s32.totalorder %s19, 1
          %s295 = scalar_select %p294, %s19, 1
          %s296 = smul.addr %s295, 16
          %s297 = smul.addr %s296, 4
          %s298 = scalar_lea.vmem %s5, %s297
        $region40: #{tpu_custom_call.1} parent=31 // pred_fallthru
          _
        // Predicated region
        $region41: #{tpu_custom_call.1} parent=31 // pred_check
          %p299 = pneg %p175
        $region42: #{tpu_custom_call.1} parent=31 // pred_check_branch
          %301 = sbr.rel (%p299) target = $region44
        $region43: #{tpu_custom_call.1} parent=31 // pred_region
          %p302 = scmp.lt.s32.totalorder %s19, 1
          %s303 = scalar_select %p302, %s19, 1
          %s304 = scalar_lea.vmem %s6, %s303
        $region44: #{tpu_custom_call.1} parent=31 // pred_fallthru
          _
        // Predicated region
        $region45: #{tpu_custom_call.1} parent=31 // pred_check
          %p305 = pneg %p201
        $region46: #{tpu_custom_call.1} parent=31 // pred_check_branch
          %307 = sbr.rel (%p305) target = $region48
        $region47: #{tpu_custom_call.1} parent=31 // pred_region
          %s308 = sand.u32 %s191, 1
          %s309 = scalar_lea.sflag [#allocation3], %s308
          %s310 = sand.u32 %s191, 1
          %s311 = smul.addr %s310, 64
          %s312 = scalar_lea.vmem [#allocation2], %s311
          %s314 = ssub.s32 1024, 1024
          %315 = vsyncadd %s309, %s314
          %s316 = smul.addr %s19, 16
          %s317 = smul.addr %s316, 64
          %s318 = scalar_lea.hbm %s7, %s317
          %s319 = sshll.u32 %s312, 4
          %s320 = int_to_ptr.vmem [resolvable:$true] %s319
          %325 = dma.hbm_to_vmem [thread:$0]  %s318, 1024, %s320, %s309, 64, 64, 4
        $region48: #{tpu_custom_call.1} parent=31 // pred_fallthru
          _
        // Predicated region
        $region49: #{tpu_custom_call.1} parent=31 // pred_check
          %p326 = pneg %p227
        $region50: #{tpu_custom_call.1} parent=31 // pred_check_branch
          %328 = sbr.rel (%p326) target = $region52
        $region51: #{tpu_custom_call.1} parent=31 // pred_region
          %p329 = scmp.lt.s32.totalorder %s19, 1
          %s330 = scalar_select %p329, %s19, 1
          %s331 = scalar_lea.vmem %s8, %s330
        $region52: #{tpu_custom_call.1} parent=31 // pred_fallthru
          _
      $region32: #{tpu_custom_call.1} parent=5 // pred_fallthru
        _
      %p332 = scmp.le.s32.totalorder 1, %s19
      %p333 = scmp.lt.s32.totalorder %s19, 3
      %p334 = pnand %p332, %p333
      %p335 = pneg %p334
      // Predicated region
      $region53: #{tpu_custom_call.1} parent=5 // pred_check
        _
      $region54: #{tpu_custom_call.1} parent=5 // pred_check_branch
        %337 = sbr.rel (%p334) target = $region56
      $region55: #{tpu_custom_call.1} parent=5 // pred_region
        %s338 = ssub.s32 %s19, 1
        %s339 = sand.u32 %s194, 1
        %s340 = scalar_lea.sflag [#allocation3], %s339
        %s341 = sand.u32 %s194, 1
        %s342 = smul.addr %s341, 64
        %s343 = scalar_lea.vmem [#allocation2], %s342
        // Predicated region
        $region57: #{tpu_custom_call.1} parent=55 // pred_check
          %p344 = pneg %p207
        $region58: #{tpu_custom_call.1} parent=55 // pred_check_branch
          %346 = sbr.rel (%p344) target = $region60
        $region59: #{tpu_custom_call.1} parent=55 // pred_region
          %347 = dma.done %s340, 1024
        $region60: #{tpu_custom_call.1} parent=55 // pred_fallthru
          _
        %p348 = pneg %p40
        %p349 = pneg %p37
        %p350 = pneg %p61
        %p351 = pneg %p58
        %p352 = pneg %p82
        %p353 = pneg %p79
        %p354 = pneg %p103
        %p355 = pneg %p100
        %p356 = scmp.lt.s32.totalorder %s24, 1
        %s357 = scalar_select %p356, %s24, 1
        %s358 = scalar_lea.vmem %s4, %s357
        %p359 = pneg %p129
        %p360 = pneg %p126
        %p361 = scmp.lt.s32.totalorder %s24, 1
        %s362 = scalar_select %p361, %s24, 1
        %s363 = smul.addr %s362, 16
        %s364 = smul.addr %s363, 4
        %s365 = scalar_lea.vmem %s5, %s364
        %p366 = pneg %p155
        %p367 = pneg %p152
        %p368 = scmp.lt.s32.totalorder %s24, 1
        %s369 = scalar_select %p368, %s24, 1
        %s370 = scalar_lea.vmem %s6, %s369
        %p371 = pneg %p181
        %p372 = pneg %p178
        %s373 = sand.u32 %s194, 1
        %s374 = scalar_lea.sflag [#allocation3], %s373
        %s375 = sand.u32 %s194, 1
        %s376 = smul.addr %s375, 64
        %s377 = scalar_lea.vmem [#allocation2], %s376
        %p378 = pneg %p207
        %p379 = pneg %p204
        %p380 = scmp.lt.s32.totalorder %s24, 1
        %s381 = scalar_select %p380, %s24, 1
        %s382 = scalar_lea.vmem %s8, %s381
        %p383 = pneg %p233
        %p384 = pneg %p230
        %p385 = pneg %p254
        %p386 = pneg %p251
        %p387 = scmp.lt.s32.totalorder %s24, 1
        %s388 = scalar_select %p387, %s24, 1
        %s389 = scalar_lea.vmem %s4, %s388
        %p390 = scmp.lt.s32.totalorder %s24, 1
        %s391 = scalar_select %p390, %s24, 1
        %s392 = smul.addr %s391, 16
        %s393 = smul.addr %s392, 4
        %s394 = scalar_lea.vmem %s5, %s393
        %p395 = scmp.lt.s32.totalorder %s24, 1
        %s396 = scalar_select %p395, %s24, 1
        %s397 = scalar_lea.vmem %s6, %s396
        %p398 = scmp.lt.s32.totalorder %s24, 1
        %s399 = scalar_select %p398, %s24, 1
        %s400 = scalar_lea.vmem %s8, %s399
        %p402 = scmp.eq.s32.totalorder %s24, 0
        // Predicated region
        $region61: #{tpu_custom_call.1} parent=55 // pred_check
          %p403 = pneg %p402
        $region62: #{tpu_custom_call.1} parent=55 // pred_check_branch
          %405 = sbr.rel (%p403) target = $region64
        $region63: #{tpu_custom_call.1} parent=55 // pred_region
          %v406 = vld [vmem:[%s0] sm:$0xf]
          %v407 = vld [vmem:[%s0 + $0x4] sm:$0xf]
          %408 = vst [vmem:[#allocation5] sm:$0xf] %v406
          %409 = vst [vmem:[#allocation5 + $0x4] sm:$0xf] %v407
        $region64: #{tpu_custom_call.1} parent=55 // pred_fallthru
          _
        %v410 = vld [vmem:[#allocation5] sm:$0xf]
        %v411 = vld [vmem:[#allocation5 + $0x4] sm:$0xf]
        %v412 = vld [vmem:[%s394] sm:$0xf]
        %v413 = vld [vmem:[%s394 + $0x4] sm:$0xf]
        %v414 = vld [vmem:[%s394 + $0x8] sm:$0xf]
        %v415 = vld [vmem:[%s394 + $0xc] sm:$0xf]
        %v416 = vld [vmem:[%s394 + $0x10] sm:$0xf]
        %v417 = vld [vmem:[%s394 + $0x14] sm:$0xf]
        %v418 = vld [vmem:[%s394 + $0x18] sm:$0xf]
        %v419 = vld [vmem:[%s394 + $0x1c] sm:$0xf]
        %v420 = vld [vmem:[%s394 + $0x20] sm:$0xf]
        %v421 = vld [vmem:[%s394 + $0x24] sm:$0xf]
        %v422 = vld [vmem:[%s394 + $0x28] sm:$0xf]
        %v423 = vld [vmem:[%s394 + $0x2c] sm:$0xf]
        %v424 = vld [vmem:[%s394 + $0x30] sm:$0xf]
        %v425 = vld [vmem:[%s394 + $0x34] sm:$0xf]
        %v426 = vld [vmem:[%s394 + $0x38] sm:$0xf]
        %v427 = vld [vmem:[%s394 + $0x3c] sm:$0xf]
        %v428 = vld [vmem:[%s397] sm:$0x1]
        %v430 = vlaneseq
        %v431 = vshrl.u32 %v430, 7
        %v432 = vsub.s32 0, %v431
        %v433 = vrot.slane %v428, %v432
        %v437 = vunpack.c.l.b16 %v410
        %v438 = vunpack.c.l.b16 %v411
        %v439 = vpack.c.b16 %v438, %v437
        %v457 = vunpack.c.l.b16 %v412
        %v458 = vunpack.c.l.b16 %v413
        %v459 = vunpack.c.l.b16 %v414
        %v460 = vunpack.c.l.b16 %v415
        %v461 = vunpack.c.l.b16 %v416
        %v462 = vunpack.c.l.b16 %v417
        %v463 = vunpack.c.l.b16 %v418
        %v464 = vunpack.c.l.b16 %v419
        %v465 = vunpack.c.l.b16 %v420
        %v466 = vunpack.c.l.b16 %v421
        %v467 = vunpack.c.l.b16 %v422
        %v468 = vunpack.c.l.b16 %v423
        %v469 = vunpack.c.l.b16 %v424
        %v470 = vunpack.c.l.b16 %v425
        %v471 = vunpack.c.l.b16 %v426
        %v472 = vunpack.c.l.b16 %v427
        %v473 = vpack.c.b16 %v458, %v457
        %v474 = vpack.c.b16 %v460, %v459
        %v475 = vpack.c.b16 %v462, %v461
        %v476 = vpack.c.b16 %v464, %v463
        %v477 = vpack.c.b16 %v466, %v465
        %v478 = vpack.c.b16 %v468, %v467
        %v479 = vpack.c.b16 %v470, %v469
        %v480 = vpack.c.b16 %v472, %v471
        %489 = vmatprep.subr.bf16.mxu0 0
        %490 = vmatpush1.bf16.msra.mxu0 %v480
        %491 = vmatprep.subr.bf16.mxu0 0
        %492 = vmatpush1.bf16.msra.mxu0 %v479
        %493 = vmatprep.subr.bf16.mxu0 0
        %494 = vmatpush1.bf16.msra.mxu0 %v478
        %495 = vmatprep.subr.bf16.mxu0 0
        %496 = vmatpush1.bf16.msra.mxu0 %v477
        %497 = vmatprep.subr.bf16.mxu0 0
        %498 = vmatpush1.bf16.msra.mxu0 %v476
        %499 = vmatprep.subr.bf16.mxu0 0
        %500 = vmatpush1.bf16.msra.mxu0 %v475
        %501 = vmatprep.subr.bf16.mxu0 0
        %502 = vmatpush1.bf16.msra.mxu0 %v474
        %503 = vmatprep.subr.bf16.mxu0 0
        %504 = vmatpush1.bf16.msra.mxu0 %v473
        %505 = vmatprep.subr.bf16.mxu0 0
        %506 = vmatpush2.bf16.msra.mxu0 0
        %507 = vmatprep.subr.bf16.mxu0 0
        %508 = vmatpush2.bf16.msra.mxu0 0
        %509 = vmatprep.subr.bf16.mxu0 0
        %510 = vmatpush2.bf16.msra.mxu0 0
        %511 = vmatprep.subr.bf16.mxu0 0
        %512 = vmatpush2.bf16.msra.mxu0 0
        %513 = vmatprep.subr.bf16.mxu0 0
        %514 = vmatpush2.bf16.msra.mxu0 0
        %515 = vmatprep.subr.bf16.mxu0 0
        %516 = vmatpush2.bf16.msra.mxu0 0
        %517 = vmatprep.subr.bf16.mxu0 0
        %518 = vmatpush2.bf16.msra.mxu0 0
        %519 = vmatprep.subr.bf16.mxu0 0
        %520 = vmatpush2.bf16.msra.mxu0 0
        %521 = vmatprep.mubr.bf16.mxu0 0
        %522 = vmatmul.mubr.bf16.gmra.mxu0 %v439
        %v523 = vpop.f32.mrf.mxu0
        %v524 = vadd.f32 %v433, %v523
        %v525 = vpop.f32.mrf.mxu0
        %v526 = vpop.f32.mrf.mxu0
        %v527 = vadd.f32 %v433, %v526
        %v528 = vpop.f32.mrf.mxu0
        %529 = vdwg.mxu0
        %v530 = vmax.f32 %v524, 0.0
        %v531 = vmax.f32 %v527, 0.0
        %v532 = vld [vmem:[%s1] sm:$0xf]
        %v533 = vld [vmem:[%s1 + $0x4] sm:$0xf]
        %v534 = vpack.c.bf16 %v531, %v530
        %v537 = vunpack.c.l.b16 %v532
        %v538 = vunpack.c.l.b16 %v533
        %v539 = vpack.c.b16 %v538, %v537
        %541 = vxpose.xlu0.c.b16.start [1/8] %v539, 128
        %542 = vxpose.xlu0.c.b16.cont [2/8] 0, 128
        %543 = vxpose.xlu0.c.b16.cont [3/8] 0, 128
        %544 = vxpose.xlu0.c.b16.cont [4/8] 0, 128
        %545 = vxpose.xlu0.c.b16.cont [5/8] 0, 128
        %546 = vxpose.xlu0.c.b16.cont [6/8] 0, 128
        %547 = vxpose.xlu0.c.b16.cont [7/8] 0, 128
        %548 = vxpose.xlu0.c.b16.end [8/8] 0, 128
        %v549 = vpop.trf.xlu0
        %v550 = vpop.trf.xlu0
        %v551 = vpop.trf.xlu0
        %v552 = vpop.trf.xlu0
        %v553 = vpop.trf.xlu0
        %v554 = vpop.trf.xlu0
        %v555 = vpop.trf.xlu0
        %v556 = vpop.trf.xlu0
        %vm557 = vcmask 130048
        %v559 = vsel %vm557, %v549, 0
        %v562 = vsel %vm557, %v550, 0
        %v565 = vsel %vm557, %v551, 0
        %v568 = vsel %vm557, %v552, 0
        %v571 = vsel %vm557, %v553, 0
        %v574 = vsel %vm557, %v554, 0
        %v577 = vsel %vm557, %v555, 0
        %v580 = vsel %vm557, %v556, 0
        %582 = vmatprep.subr.bf16.mxu0 0
        %583 = vmatpush1.bf16.msra.mxu0 0
        %584 = vmatprep.subr.bf16.mxu0 0
        %585 = vmatpush1.bf16.msra.mxu0 0
        %586 = vmatprep.subr.bf16.mxu0 0
        %587 = vmatpush1.bf16.msra.mxu0 0
        %588 = vmatprep.subr.bf16.mxu0 0
        %589 = vmatpush1.bf16.msra.mxu0 0
        %590 = vmatprep.subr.bf16.mxu0 0
        %591 = vmatpush1.bf16.msra.mxu0 0
        %592 = vmatprep.subr.bf16.mxu0 0
        %593 = vmatpush1.bf16.msra.mxu0 0
        %594 = vmatprep.subr.bf16.mxu0 0
        %595 = vmatpush1.bf16.msra.mxu0 0
        %596 = vmatprep.subr.bf16.mxu0 0
        %597 = vmatpush1.bf16.msra.mxu0 %v534
        %598 = vmatprep.subr.bf16.mxu0 0
        %599 = vmatpush2.bf16.msra.mxu0 0
        %600 = vmatprep.subr.bf16.mxu0 0
        %601 = vmatpush2.bf16.msra.mxu0 0
        %602 = vmatprep.subr.bf16.mxu0 0
        %603 = vmatpush2.bf16.msra.mxu0 0
        %604 = vmatprep.subr.bf16.mxu0 0
        %605 = vmatpush2.bf16.msra.mxu0 0
        %606 = vmatprep.subr.bf16.mxu0 0
        %607 = vmatpush2.bf16.msra.mxu0 0
        %608 = vmatprep.subr.bf16.mxu0 0
        %609 = vmatpush2.bf16.msra.mxu0 0
        %610 = vmatprep.subr.bf16.mxu0 0
        %611 = vmatpush2.bf16.msra.mxu0 0
        %612 = vmatprep.subr.bf16.mxu0 0
        %613 = vmatpush2.bf16.msra.mxu0 0
        %614 = vmatprep.mubr.bf16.mxu0 0
        %615 = vmatmul.mubr.bf16.gmra.mxu0 %v559
        %v616 = vpop.f32.mrf.mxu0
        %v617 = vadd.f32 0.0, %v616
        %v618 = vpop.f32.mrf.mxu0
        %v619 = vpop.f32.mrf.mxu0
        %v620 = vadd.f32 0.0, %v619
        %v621 = vpop.f32.mrf.mxu0
        %622 = vmatprep.mubr.bf16.mxu0 0
        %623 = vmatmul.mubr.bf16.gmra.mxu0 %v562
        %v624 = vpop.f32.mrf.mxu0
        %v625 = vadd.f32 0.0, %v624
        %v626 = vpop.f32.mrf.mxu0
        %v627 = vpop.f32.mrf.mxu0
        %v628 = vadd.f32 0.0, %v627
        %v629 = vpop.f32.mrf.mxu0
        %630 = vmatprep.mubr.bf16.mxu0 0
        %631 = vmatmul.mubr.bf16.gmra.mxu0 %v565
        %v632 = vpop.f32.mrf.mxu0
        %v633 = vadd.f32 0.0, %v632
        %v634 = vpop.f32.mrf.mxu0
        %v635 = vpop.f32.mrf.mxu0
        %v636 = vadd.f32 0.0, %v635
        %v637 = vpop.f32.mrf.mxu0
        %638 = vmatprep.mubr.bf16.mxu0 0
        %639 = vmatmul.mubr.bf16.gmra.mxu0 %v568
        %v640 = vpop.f32.mrf.mxu0
        %v641 = vadd.f32 0.0, %v640
        %v642 = vpop.f32.mrf.mxu0
        %v643 = vpop.f32.mrf.mxu0
        %v644 = vadd.f32 0.0, %v643
        %v645 = vpop.f32.mrf.mxu0
        %646 = vmatprep.mubr.bf16.mxu0 0
        %647 = vmatmul.mubr.bf16.gmra.mxu0 %v571
        %v648 = vpop.f32.mrf.mxu0
        %v649 = vadd.f32 0.0, %v648
        %v650 = vpop.f32.mrf.mxu0
        %v651 = vpop.f32.mrf.mxu0
        %v652 = vadd.f32 0.0, %v651
        %v653 = vpop.f32.mrf.mxu0
        %654 = vmatprep.mubr.bf16.mxu0 0
        %655 = vmatmul.mubr.bf16.gmra.mxu0 %v574
        %v656 = vpop.f32.mrf.mxu0
        %v657 = vadd.f32 0.0, %v656
        %v658 = vpop.f32.mrf.mxu0
        %v659 = vpop.f32.mrf.mxu0
        %v660 = vadd.f32 0.0, %v659
        %v661 = vpop.f32.mrf.mxu0
        %662 = vmatprep.mubr.bf16.mxu0 0
        %663 = vmatmul.mubr.bf16.gmra.mxu0 %v577
        %v664 = vpop.f32.mrf.mxu0
        %v665 = vadd.f32 0.0, %v664
        %v666 = vpop.f32.mrf.mxu0
        %v667 = vpop.f32.mrf.mxu0
        %v668 = vadd.f32 0.0, %v667
        %v669 = vpop.f32.mrf.mxu0
        %670 = vmatprep.mubr.bf16.mxu0 0
        %671 = vmatmul.mubr.bf16.gmra.mxu0 %v580
        %v672 = vpop.f32.mrf.mxu0
        %v673 = vadd.f32 0.0, %v672
        %v674 = vpop.f32.mrf.mxu0
        %v675 = vpop.f32.mrf.mxu0
        %v676 = vadd.f32 0.0, %v675
        %v677 = vpop.f32.mrf.mxu0
        %678 = vdwg.mxu0
        %v679 = vld [vmem:[%s2] sm:$0xff]
        %v680 = vld [vmem:[%s2 + $0x8] sm:$0xff]
        %v681 = vld [vmem:[%s2 + $0x10] sm:$0xff]
        %v682 = vld [vmem:[%s2 + $0x18] sm:$0xff]
        %v683 = vld [vmem:[%s2 + $0x20] sm:$0xff]
        %v684 = vld [vmem:[%s2 + $0x28] sm:$0xff]
        %v685 = vld [vmem:[%s2 + $0x30] sm:$0xff]
        %v686 = vld [vmem:[%s2 + $0x38] sm:$0xff]
        %v687 = vld [vmem:[%s2 + $0x40] sm:$0xff]
        %v688 = vld [vmem:[%s2 + $0x48] sm:$0xff]
        %v689 = vld [vmem:[%s2 + $0x50] sm:$0xff]
        %v690 = vld [vmem:[%s2 + $0x58] sm:$0xff]
        %v691 = vld [vmem:[%s2 + $0x60] sm:$0xff]
        %v692 = vld [vmem:[%s2 + $0x68] sm:$0xff]
        %v693 = vld [vmem:[%s2 + $0x70] sm:$0xff]
        %v694 = vld [vmem:[%s2 + $0x78] sm:$0xff]
        %696 = vset.pattern.permute.xlu0 0
        %697 = vperm.xlu0 %696, %v679
        %v698 = vpop.permute.xlu0 %697
        %701 = vset.pattern.permute.xlu0 0
        %702 = vperm.xlu0 %701, %v680
        %v703 = vpop.permute.xlu0 %702
        %706 = vset.pattern.permute.xlu0 0
        %707 = vperm.xlu0 %706, %v681
        %v708 = vpop.permute.xlu0 %707
        %711 = vset.pattern.permute.xlu0 0
        %712 = vperm.xlu0 %711, %v682
        %v713 = vpop.permute.xlu0 %712
        %716 = vset.pattern.permute.xlu0 0
        %717 = vperm.xlu0 %716, %v683
        %v718 = vpop.permute.xlu0 %717
        %721 = vset.pattern.permute.xlu0 0
        %722 = vperm.xlu0 %721, %v684
        %v723 = vpop.permute.xlu0 %722
        %726 = vset.pattern.permute.xlu0 0
        %727 = vperm.xlu0 %726, %v685
        %v728 = vpop.permute.xlu0 %727
        %731 = vset.pattern.permute.xlu0 0
        %732 = vperm.xlu0 %731, %v686
        %v733 = vpop.permute.xlu0 %732
        %736 = vset.pattern.permute.xlu0 0
        %737 = vperm.xlu0 %736, %v687
        %v738 = vpop.permute.xlu0 %737
        %741 = vset.pattern.permute.xlu0 0
        %742 = vperm.xlu0 %741, %v688
        %v743 = vpop.permute.xlu0 %742
        %746 = vset.pattern.permute.xlu0 0
        %747 = vperm.xlu0 %746, %v689
        %v748 = vpop.permute.xlu0 %747
        %751 = vset.pattern.permute.xlu0 0
        %752 = vperm.xlu0 %751, %v690
        %v753 = vpop.permute.xlu0 %752
        %756 = vset.pattern.permute.xlu0 0
        %757 = vperm.xlu0 %756, %v691
        %v758 = vpop.permute.xlu0 %757
        %761 = vset.pattern.permute.xlu0 0
        %762 = vperm.xlu0 %761, %v692
        %v763 = vpop.permute.xlu0 %762
        %766 = vset.pattern.permute.xlu0 0
        %767 = vperm.xlu0 %766, %v693
        %v768 = vpop.permute.xlu0 %767
        %771 = vset.pattern.permute.xlu0 0
        %772 = vperm.xlu0 %771, %v694
        %v773 = vpop.permute.xlu0 %772
        %v775 = vmul.f32 %v617, %v698
        %v776 = vmul.f32 %v620, %v703
        %v777 = vmul.f32 %v625, %v708
        %v778 = vmul.f32 %v628, %v713
        %v779 = vmul.f32 %v633, %v718
        %v780 = vmul.f32 %v636, %v723
        %v781 = vmul.f32 %v641, %v728
        %v782 = vmul.f32 %v644, %v733
        %v783 = vmul.f32 %v649, %v738
        %v784 = vmul.f32 %v652, %v743
        %v785 = vmul.f32 %v657, %v748
        %v786 = vmul.f32 %v660, %v753
        %v787 = vmul.f32 %v665, %v758
        %v788 = vmul.f32 %v668, %v763
        %v789 = vmul.f32 %v673, %v768
        %v790 = vmul.f32 %v676, %v773
        %v791 = vpack.c.bf16 %v776, %v775
        %v792 = vpack.c.bf16 %v778, %v777
        %v793 = vpack.c.bf16 %v780, %v779
        %v794 = vpack.c.bf16 %v782, %v781
        %v795 = vpack.c.bf16 %v784, %v783
        %v796 = vpack.c.bf16 %v786, %v785
        %v797 = vpack.c.bf16 %v788, %v787
        %v798 = vpack.c.bf16 %v790, %v789
        %799 = vmatprep.subr.bf16.mxu0 0
        %800 = vmatpush1.bf16.msra.mxu0 %v798
        %801 = vmatprep.subr.bf16.mxu0 0
        %802 = vmatpush1.bf16.msra.mxu0 %v797
        %803 = vmatprep.subr.bf16.mxu0 0
        %804 = vmatpush1.bf16.msra.mxu0 %v796
        %805 = vmatprep.subr.bf16.mxu0 0
        %806 = vmatpush1.bf16.msra.mxu0 %v795
        %807 = vmatprep.subr.bf16.mxu0 0
        %808 = vmatpush1.bf16.msra.mxu0 %v794
        %809 = vmatprep.subr.bf16.mxu0 0
        %810 = vmatpush1.bf16.msra.mxu0 %v793
        %811 = vmatprep.subr.bf16.mxu0 0
        %812 = vmatpush1.bf16.msra.mxu0 %v792
        %813 = vmatprep.subr.bf16.mxu0 0
        %814 = vmatpush1.bf16.msra.mxu0 %v791
        %815 = vmatprep.subr.bf16.mxu0 0
        %816 = vmatpush2.bf16.msra.mxu0 0
        %817 = vmatprep.subr.bf16.mxu0 0
        %818 = vmatpush2.bf16.msra.mxu0 0
        %819 = vmatprep.subr.bf16.mxu0 0
        %820 = vmatpush2.bf16.msra.mxu0 0
        %821 = vmatprep.subr.bf16.mxu0 0
        %822 = vmatpush2.bf16.msra.mxu0 0
        %823 = vmatprep.subr.bf16.mxu0 0
        %824 = vmatpush2.bf16.msra.mxu0 0
        %825 = vmatprep.subr.bf16.mxu0 0
        %826 = vmatpush2.bf16.msra.mxu0 0
        %827 = vmatprep.subr.bf16.mxu0 0
        %828 = vmatpush2.bf16.msra.mxu0 0
        %829 = vmatprep.subr.bf16.mxu0 0
        %830 = vmatpush2.bf16.msra.mxu0 0
        %831 = vmatprep.mubr.bf16.mxu0 0
        %832 = vmatmul.mubr.bf16.gmra.mxu0 %v539
        %v833 = vpop.f32.mrf.mxu0
        %v834 = vadd.f32 0.0, %v833
        %v835 = vpop.f32.mrf.mxu0
        %v836 = vpop.f32.mrf.mxu0
        %v837 = vadd.f32 0.0, %v836
        %v838 = vpop.f32.mrf.mxu0
        %839 = vdwg.mxu0
        %v840 = vld [vmem:[%s3] sm:$0xff]
        %v841 = vld [vmem:[%s3 + $0x8] sm:$0xff]
        %843 = vset.pattern.permute.xlu0 0
        %844 = vperm.xlu0 %843, %v840
        %v845 = vpop.permute.xlu0 %844
        %848 = vset.pattern.permute.xlu0 0
        %849 = vperm.xlu0 %848, %v841
        %v850 = vpop.permute.xlu0 %849
        %v852 = vmul.f32 %v834, %v845
        %v853 = vmul.f32 %v837, %v850
        %v854 = vpack.c.bf16 %v853, %v852
        %v855 = vld [vmem:[%s343] sm:$0xf]
        %v856 = vld [vmem:[%s343 + $0x4] sm:$0xf]
        %v857 = vld [vmem:[%s343 + $0x8] sm:$0xf]
        %v858 = vld [vmem:[%s343 + $0xc] sm:$0xf]
        %v859 = vld [vmem:[%s343 + $0x10] sm:$0xf]
        %v860 = vld [vmem:[%s343 + $0x14] sm:$0xf]
        %v861 = vld [vmem:[%s343 + $0x18] sm:$0xf]
        %v862 = vld [vmem:[%s343 + $0x1c] sm:$0xf]
        %v863 = vld [vmem:[%s343 + $0x20] sm:$0xf]
        %v864 = vld [vmem:[%s343 + $0x24] sm:$0xf]
        %v865 = vld [vmem:[%s343 + $0x28] sm:$0xf]
        %v866 = vld [vmem:[%s343 + $0x2c] sm:$0xf]
        %v867 = vld [vmem:[%s343 + $0x30] sm:$0xf]
        %v868 = vld [vmem:[%s343 + $0x34] sm:$0xf]
        %v869 = vld [vmem:[%s343 + $0x38] sm:$0xf]
        %v870 = vld [vmem:[%s343 + $0x3c] sm:$0xf]
        %v871 = vld [vmem:[%s400] sm:$0x1]
        %v873 = vlaneseq
        %v874 = vshrl.u32 %v873, 7
        %v875 = vsub.s32 0, %v874
        %v876 = vrot.slane %v871, %v875
        %v894 = vunpack.c.l.b16 %v855
        %v895 = vunpack.c.l.b16 %v856
        %v896 = vunpack.c.l.b16 %v857
        %v897 = vunpack.c.l.b16 %v858
        %v898 = vunpack.c.l.b16 %v859
        %v899 = vunpack.c.l.b16 %v860
        %v900 = vunpack.c.l.b16 %v861
        %v901 = vunpack.c.l.b16 %v862
        %v902 = vunpack.c.l.b16 %v863
        %v903 = vunpack.c.l.b16 %v864
        %v904 = vunpack.c.l.b16 %v865
        %v905 = vunpack.c.l.b16 %v866
        %v906 = vunpack.c.l.b16 %v867
        %v907 = vunpack.c.l.b16 %v868
        %v908 = vunpack.c.l.b16 %v869
        %v909 = vunpack.c.l.b16 %v870
        %v910 = vpack.c.b16 %v895, %v894
        %v911 = vpack.c.b16 %v897, %v896
        %v912 = vpack.c.b16 %v899, %v898
        %v913 = vpack.c.b16 %v901, %v900
        %v914 = vpack.c.b16 %v903, %v902
        %v915 = vpack.c.b16 %v905, %v904
        %v916 = vpack.c.b16 %v907, %v906
        %v917 = vpack.c.b16 %v909, %v908
        %926 = vmatprep.subr.bf16.mxu0 0
        %927 = vmatpush1.bf16.msra.mxu0 %v917
        %928 = vmatprep.subr.bf16.mxu0 0
        %929 = vmatpush1.bf16.msra.mxu0 %v916
        %930 = vmatprep.subr.bf16.mxu0 0
        %931 = vmatpush1.bf16.msra.mxu0 %v915
        %932 = vmatprep.subr.bf16.mxu0 0
        %933 = vmatpush1.bf16.msra.mxu0 %v914
        %934 = vmatprep.subr.bf16.mxu0 0
        %935 = vmatpush1.bf16.msra.mxu0 %v913
        %936 = vmatprep.subr.bf16.mxu0 0
        %937 = vmatpush1.bf16.msra.mxu0 %v912
        %938 = vmatprep.subr.bf16.mxu0 0
        %939 = vmatpush1.bf16.msra.mxu0 %v911
        %940 = vmatprep.subr.bf16.mxu0 0
        %941 = vmatpush1.bf16.msra.mxu0 %v910
        %942 = vmatprep.subr.bf16.mxu0 0
        %943 = vmatpush2.bf16.msra.mxu0 0
        %944 = vmatprep.subr.bf16.mxu0 0
        %945 = vmatpush2.bf16.msra.mxu0 0
        %946 = vmatprep.subr.bf16.mxu0 0
        %947 = vmatpush2.bf16.msra.mxu0 0
        %948 = vmatprep.subr.bf16.mxu0 0
        %949 = vmatpush2.bf16.msra.mxu0 0
        %950 = vmatprep.subr.bf16.mxu0 0
        %951 = vmatpush2.bf16.msra.mxu0 0
        %952 = vmatprep.subr.bf16.mxu0 0
        %953 = vmatpush2.bf16.msra.mxu0 0
        %954 = vmatprep.subr.bf16.mxu0 0
        %955 = vmatpush2.bf16.msra.mxu0 0
        %956 = vmatprep.subr.bf16.mxu0 0
        %957 = vmatpush2.bf16.msra.mxu0 0
        %958 = vmatprep.mubr.bf16.mxu0 0
        %959 = vmatmul.mubr.bf16.gmra.mxu0 %v854
        %v960 = vpop.f32.mrf.mxu0
        %v961 = vadd.f32 %v876, %v960
        %v962 = vpop.f32.mrf.mxu0
        %v963 = vpop.f32.mrf.mxu0
        %v964 = vadd.f32 %v876, %v963
        %v965 = vpop.f32.mrf.mxu0
        %966 = vdwg.mxu0
        %v967 = vld [vmem:[%s389] sm:$0x1]
        %v968 = vadd.f32 %v967, 1.0
        %v970 = vlaneseq
        %v971 = vshrl.u32 %v970, 7
        %v972 = vsub.s32 0, %v971
        %v973 = vrot.slane %v968, %v972
        %v975 = vmul.f32 %v961, %v973
        %v976 = vmul.f32 %v964, %v973
        %v977 = vmax.f32 %v975, 0.0
        %v978 = vmax.f32 %v976, 0.0
        %v979 = vpack.c.bf16 %v978, %v977
        %v981 = vunpack.c.l.b16 %v979
        %v982 = vunpack.c.h.b16 %v979
        %v983 = vpack.c.b16 %v981, %v981
        %v984 = vpack.c.b16 %v982, %v982
        %987 = vst [vmem:[#allocation5] sm:$0xf] %v983
        %988 = vst [vmem:[#allocation5 + $0x4] sm:$0xf] %v984
        // Predicated region
        $region65: #{tpu_custom_call.1} parent=55 // pred_check
          %p989 = pneg %p251
        $region66: #{tpu_custom_call.1} parent=55 // pred_check_branch
          %991 = sbr.rel (%p989) target = $region68
        $region67: #{tpu_custom_call.1} parent=55 // pred_region
          %s993 = ssub.s32 128, 128
          %994 = vsyncadd [#allocation4], %s993
          %s995 = sshll.u32 [#allocation5], 4
          %s996 = int_to_ptr.vmem [resolvable:$true] %s995
          %1001 = dma.vmem_to_hbm [thread:$0]  %s996, 128, %s9, [#allocation4], 64, 64, 4
        $region68: #{tpu_custom_call.1} parent=55 // pred_fallthru
          _
        // Predicated region
        $region69: #{tpu_custom_call.1} parent=55 // pred_check
          %p1002 = pneg %p251
        $region70: #{tpu_custom_call.1} parent=55 // pred_check_branch
          %1004 = sbr.rel (%p1002) target = $region72
        $region71: #{tpu_custom_call.1} parent=55 // pred_region
          %1005 = dma.done [#allocation4], 128
        $region72: #{tpu_custom_call.1} parent=55 // pred_fallthru
          _
      $region56: #{tpu_custom_call.1} parent=5 // pred_fallthru
        _
      %p1006 = scmp.le.s32.totalorder 2, %s19
      // Predicated region
      $region73: #{tpu_custom_call.1} parent=5 // pred_check
        %p1007 = pneg %p1006
      $region74: #{tpu_custom_call.1} parent=5 // pred_check_branch
        %1009 = sbr.rel (%p1007) target = $region76
      $region75: #{tpu_custom_call.1} parent=5 // pred_region
        %s1010 = ssub.s32 %s19, 2
      $region76: #{tpu_custom_call.1} parent=5 // pred_fallthru
        _
    $region6: #{tpu_custom_call.1} parent=1 // loop_footer
      %s23 = sadd.s32 1, %s19
    $region7: #{tpu_custom_call.1} parent=1 // loop_footer_branch
      %18 = sbr.rel target = $region3
    $region8: #{tpu_custom_call.1} parent=1 // loop_exit
      _
    %1011 = vsyncpa [#allocation3], 1
    %s1012 = scalar_lea.sflag [#allocation3], 1
    %1013 = vsyncpa %s1012, 1
    %1014 = vsyncpa [#allocation4], 1
    %s1015 = scalar_lea.sflag [#allocation4], 1
    %1016 = vsyncpa %s1015, 1

</llo_original>
